<compile_context>
chip_gen: v5e
topology: v5e:2x2
jax: 0.10.0
libtpu: 0.0.40
codegen_flags: <defaults>
</compile_context>

<pallas_src>
import jax
import jax.numpy as jnp
from jax.experimental import pallas as pl
from jax.experimental.pallas import tpu as pltpu

MAX_TILE_B = 512   # knee of the measured tile-size curve (512 ~ 85% of roofline)


def dqn_kernel(x_ref, w1_ref, b1_ref, w2_ref, b2_ref, w3_ref, b3_ref, out_ref):
    x = x_ref[...]                                                   # bf16 [tb, S]

    # fc1 + ReLU  (bf16 MXU matmul, f32 accumulation, f32 epilogue)
    h1 = jnp.dot(x, w1_ref[...], preferred_element_type=jnp.float32) + b1_ref[...]
    h1 = jnp.maximum(h1, 0.0).astype(jnp.bfloat16)

    # fc2 + ReLU
    h2 = jnp.dot(h1, w2_ref[...], preferred_element_type=jnp.float32) + b2_ref[...]
    h2 = jnp.maximum(h2, 0.0).astype(jnp.bfloat16)

    # fc3 (no activation); output written at its natural [tb, action_size] width
    out = jnp.dot(h2, w3_ref[...], preferred_element_type=jnp.float32) + b3_ref[...]
    out_ref[...] = out.astype(out_ref.dtype)


def init_params(key, state_size, action_size, hidden_size=128):
    """Deterministic synthetic init mirroring nn.Linear (W stored as [out, in])."""
    ks = jax.random.split(key, 6)
    s1 = 1.0 / jnp.sqrt(state_size)
    s2 = 1.0 / jnp.sqrt(hidden_size)
    return {
        "w1": jax.random.uniform(ks[0], (hidden_size, state_size), jnp.float32, -s1, s1),
        "b1": jax.random.uniform(ks[1], (hidden_size,), jnp.float32, -s1, s1),
        "w2": jax.random.uniform(ks[2], (hidden_size, hidden_size), jnp.float32, -s2, s2),
        "b2": jax.random.uniform(ks[3], (hidden_size,), jnp.float32, -s2, s2),
        "w3": jax.random.uniform(ks[4], (action_size, hidden_size), jnp.float32, -s2, s2),
        "b3": jax.random.uniform(ks[5], (action_size,), jnp.float32, -s2, s2),
    }


def prepare_kernel_params(tparams):
    """Transpose to [in, out]; weights -> bf16 (MXU inputs), biases stay f32."""
    bf = jnp.bfloat16
    return {
        "w1_t": tparams["w1"].T.astype(bf),                    # [S, H]
        "b1": tparams["b1"].reshape(1, -1).astype(jnp.float32),
        "w2_t": tparams["w2"].T.astype(bf),                    # [H, H]
        "b2": tparams["b2"].reshape(1, -1).astype(jnp.float32),
        "w3_t": tparams["w3"].T.astype(bf),                    # [H, A]
        "b3": tparams["b3"].reshape(1, -1).astype(jnp.float32),
    }


def _round_up(n, m):
    return ((n + m - 1) // m) * m


def _choose_tile_b(batch):
    # >=2 grid steps whenever the batch allows (lets v7x split over its 2 TCs),
    # capped at MAX_TILE_B; multiple of 16 for bf16 sublane packing.
    target = max(16, -(-batch // 2))        # ceil(batch / 2), floor 16
    return _round_up(min(MAX_TILE_B, target), 16)


@jax.jit
def dqn_forward(x, kparams):
    """x: [B, state_size] float32 -> Q-values [B, action_size] float32."""
    B, state_size = x.shape
    hidden = kparams["w1_t"].shape[1]
    action_size = kparams["w3_t"].shape[1]

    tile_b = _choose_tile_b(B)
    b_pad = pl.cdiv(B, tile_b) * tile_b

    # bf16 activation stream; pad ONLY the batch axis (no K/N padding anywhere).
    xb = x.astype(jnp.bfloat16)
    if b_pad != B:
        xb = jnp.pad(xb, ((0, b_pad - B), (0, 0)))

    grid = (b_pad // tile_b,)
    x_spec = pl.BlockSpec((tile_b, state_size), lambda i: (i, 0))
    out_spec = pl.BlockSpec((tile_b, action_size), lambda i: (i, 0))

    def resident(shape):   # constant block index -> fetched once, stays in VMEM
        return pl.BlockSpec(shape, lambda i: (0, 0))

    flops = 2 * b_pad * (state_size * hidden + hidden * hidden + hidden * action_size)
    bytes_accessed = (
        2 * b_pad * state_size                                   # x (bf16)
        + 4 * b_pad * action_size                                # out (f32)
        + 2 * (state_size * hidden + hidden * hidden + hidden * action_size)  # W (bf16)
        + 4 * (hidden + hidden + action_size)                    # biases (f32)
    )

    out = pl.pallas_call(
        dqn_kernel,
        out_shape=jax.ShapeDtypeStruct((b_pad, action_size), jnp.float32),
        grid_spec=pltpu.PrefetchScalarGridSpec(
            num_scalar_prefetch=0,
            grid=grid,
            in_specs=[
                x_spec,
                resident(kparams["w1_t"].shape), resident(kparams["b1"].shape),
                resident(kparams["w2_t"].shape), resident(kparams["b2"].shape),
                resident(kparams["w3_t"].shape), resident(kparams["b3"].shape),
            ],
            out_specs=out_spec,
        ),
        compiler_params=pltpu.CompilerParams(
            dimension_semantics=("parallel",),   # v7x: shard batch grid over 2 TCs
        ),
        cost_estimate=pl.CostEstimate(
            flops=flops, transcendentals=0, bytes_accessed=bytes_accessed),
    )(xb, kparams["w1_t"], kparams["b1"], kparams["w2_t"], kparams["b2"],
      kparams["w3_t"], kparams["b3"])

    return out[:B] if b_pad != B else out


def dqn_reference_f32(x, tparams):
    p = jax.lax.Precision.HIGHEST
    h1 = jnp.maximum(jnp.dot(x, tparams["w1"].T, precision=p) + tparams["b1"], 0.0)
    h2 = jnp.maximum(jnp.dot(h1, tparams["w2"].T, precision=p) + tparams["b2"], 0.0)
    return jnp.dot(h2, tparams["w3"].T, precision=p) + tparams["b3"]


def dqn_reference_bf16(x, tparams):
    """Mirrors the kernel's bf16-input / f32-accumulate numerics exactly."""
    p = jax.lax.Precision.HIGHEST
    q = lambda a: a.astype(jnp.bfloat16).astype(jnp.float32)
    x_ = q(x)
    w1, w2, w3 = q(tparams["w1"]), q(tparams["w2"]), q(tparams["w3"])
    h1 = q(jnp.maximum(jnp.dot(x_, w1.T, precision=p) + tparams["b1"], 0.0))
    h2 = q(jnp.maximum(jnp.dot(h1, w2.T, precision=p) + tparams["b2"], 0.0))
    return jnp.dot(h2, w3.T, precision=p) + tparams["b3"]


if __name__ == "__main__":
    key = jax.random.PRNGKey(0)
    k_param, k_x1, k_x2 = jax.random.split(key, 3)

    state_size, action_size, hidden_size = 32, 8, 128
    tparams = init_params(k_param, state_size, action_size, hidden_size)
    kparams = prepare_kernel_params(tparams)

    # One aligned batch (no padding) and one ragged batch (exercises batch-only pad).
    for k_x, batch in ((k_x1, 64), (k_x2, 37)):
        x = jax.random.normal(k_x, (batch, state_size), jnp.float32)
        out = jax.block_until_ready(dqn_forward(x, kparams))
        assert out.shape == (batch, action_size)

        ref_bf16 = dqn_reference_bf16(x, tparams)   # same quantization as kernel
        assert jnp.allclose(out, ref_bf16, atol=1e-3, rtol=1e-3), \
            "mismatch vs bf16-rounded reference"

        ref_f32 = dqn_reference_f32(x, tparams)     # loose check vs true f32 math
        assert jnp.allclose(out, ref_f32, atol=5e-2, rtol=5e-2), \
            "mismatch vs f32 reference"

    print("KERNEL_OK")
</pallas_src>

<mosaic_0001>
module attributes {stable_mosaic.version = 11 : i64} {
  func.func @dqn_kernel(%arg0: i32, %arg1: memref<32x32xbf16, #tpu.memory_space<vmem>>, %arg2: memref<32x128xbf16, #tpu.memory_space<vmem>>, %arg3: memref<1x128xf32, #tpu.memory_space<vmem>>, %arg4: memref<128x128xbf16, #tpu.memory_space<vmem>>, %arg5: memref<1x128xf32, #tpu.memory_space<vmem>>, %arg6: memref<128x8xbf16, #tpu.memory_space<vmem>>, %arg7: memref<1x8xf32, #tpu.memory_space<vmem>>, %arg8: memref<32x8xf32, #tpu.memory_space<vmem>>) attributes {dimension_semantics = [#tpu.dimension_semantics<parallel>], iteration_bounds = array<i64: 2>, scalar_prefetch = 0 : i64, scratch_operands = 0 : i64, tpu.core_type = #tpu.core_type<tc>, window_params = [{transform_indices = @transform_0, window_bounds = array<i64: 32, 32>}, {pipeline_mode = #tpu.pipeline_mode<synchronous>, transform_indices = @transform_1, window_bounds = array<i64: 32, 128>}, {pipeline_mode = #tpu.pipeline_mode<synchronous>, transform_indices = @transform_2, window_bounds = array<i64: 1, 128>}, {pipeline_mode = #tpu.pipeline_mode<synchronous>, transform_indices = @transform_3, window_bounds = array<i64: 128, 128>}, {pipeline_mode = #tpu.pipeline_mode<synchronous>, transform_indices = @transform_4, window_bounds = array<i64: 1, 128>}, {pipeline_mode = #tpu.pipeline_mode<synchronous>, transform_indices = @transform_5, window_bounds = array<i64: 128, 8>}, {pipeline_mode = #tpu.pipeline_mode<synchronous>, transform_indices = @transform_6, window_bounds = array<i64: 1, 8>}, {transform_indices = @transform_7, window_bounds = array<i64: 32, 8>}]} {
    %c0 = arith.constant 0 : index
    %c0_0 = arith.constant 0 : index
    %0 = vector.load %arg1[%c0, %c0_0] : memref<32x32xbf16, #tpu.memory_space<vmem>>, vector<32x32xbf16>
    %c0_1 = arith.constant 0 : index
    %c0_2 = arith.constant 0 : index
    %1 = vector.load %arg2[%c0_1, %c0_2] : memref<32x128xbf16, #tpu.memory_space<vmem>>, vector<32x128xbf16>
    %cst = arith.constant dense<0.000000e+00> : vector<32x128xf32>
    %2 = tpu.matmul %0, %1, %cst {dimension_numbers = #tpu.dot_dimension_numbers<[1], [0], [0], [1], [0, 0, 1, 1], [], []>} : vector<32x32xbf16>, vector<32x128xbf16>, vector<32x128xf32> -> vector<32x128xf32>
    %c0_3 = arith.constant 0 : index
    %c0_4 = arith.constant 0 : index
    %3 = vector.load %arg3[%c0_3, %c0_4] : memref<1x128xf32, #tpu.memory_space<vmem>>, vector<1x128xf32>
    %4 = vector.broadcast %3 : vector<1x128xf32> to vector<32x128xf32>
    %5 = arith.addf %2, %4 : vector<32x128xf32>
    %cst_5 = arith.constant 0.000000e+00 : f32
    %6 = vector.broadcast %cst_5 : f32 to vector<32x128xf32>
    %7 = arith.maximumf %5, %6 : vector<32x128xf32>
    %8 = arith.truncf %7 : vector<32x128xf32> to vector<32x128xbf16>
    %c0_6 = arith.constant 0 : index
    %c0_7 = arith.constant 0 : index
    %9 = vector.load %arg4[%c0_6, %c0_7] : memref<128x128xbf16, #tpu.memory_space<vmem>>, vector<128x128xbf16>
    %cst_8 = arith.constant dense<0.000000e+00> : vector<32x128xf32>
    %10 = tpu.matmul %8, %9, %cst_8 {dimension_numbers = #tpu.dot_dimension_numbers<[1], [0], [0], [1], [0, 0, 1, 1], [], []>} : vector<32x128xbf16>, vector<128x128xbf16>, vector<32x128xf32> -> vector<32x128xf32>
    %c0_9 = arith.constant 0 : index
    %c0_10 = arith.constant 0 : index
    %11 = vector.load %arg5[%c0_9, %c0_10] : memref<1x128xf32, #tpu.memory_space<vmem>>, vector<1x128xf32>
    %12 = vector.broadcast %11 : vector<1x128xf32> to vector<32x128xf32>
    %13 = arith.addf %10, %12 : vector<32x128xf32>
    %cst_11 = arith.constant 0.000000e+00 : f32
    %14 = vector.broadcast %cst_11 : f32 to vector<32x128xf32>
    %15 = arith.maximumf %13, %14 : vector<32x128xf32>
    %16 = arith.truncf %15 : vector<32x128xf32> to vector<32x128xbf16>
    %c0_12 = arith.constant 0 : index
    %c0_13 = arith.constant 0 : index
    %17 = vector.load %arg6[%c0_12, %c0_13] : memref<128x8xbf16, #tpu.memory_space<vmem>>, vector<128x8xbf16>
    %cst_14 = arith.constant dense<0.000000e+00> : vector<32x8xf32>
    %18 = tpu.matmul %16, %17, %cst_14 {dimension_numbers = #tpu.dot_dimension_numbers<[1], [0], [0], [1], [0, 0, 1, 1], [], []>} : vector<32x128xbf16>, vector<128x8xbf16>, vector<32x8xf32> -> vector<32x8xf32>
    %c0_15 = arith.constant 0 : index
    %c0_16 = arith.constant 0 : index
    %19 = vector.load %arg7[%c0_15, %c0_16] : memref<1x8xf32, #tpu.memory_space<vmem>>, vector<1x8xf32>
    %20 = vector.broadcast %19 : vector<1x8xf32> to vector<32x8xf32>
    %21 = arith.addf %18, %20 : vector<32x8xf32>
    %c0_17 = arith.constant 0 : index
    %c0_18 = arith.constant 0 : index
    %22 = vector.load %arg8[%c0_17, %c0_18] : memref<32x8xf32, #tpu.memory_space<vmem>>, vector<32x8xf32>
    tpu.vector_store %arg8[%c0_17, %c0_18], %21 {strides = array<i32>} : memref<32x8xf32, #tpu.memory_space<vmem>>, vector<32x8xf32>,
    return
  }
  func.func @transform_0(%arg0: i32) -> (i32, i32) {
    %c0_i32 = arith.constant 0 : i32
    %c0_i32_0 = arith.constant 0 : i32
    return %arg0, %c0_i32 : i32, i32
  }
  func.func @transform_1(%arg0: i32) -> (i32, i32) {
    %c0_i32 = arith.constant 0 : i32
    %c0_i32_0 = arith.constant 0 : i32
    %c0_i32_1 = arith.constant 0 : i32
    return %c0_i32, %c0_i32_0 : i32, i32
  }
  func.func @transform_2(%arg0: i32) -> (i32, i32) {
    %c0_i32 = arith.constant 0 : i32
    %c0_i32_0 = arith.constant 0 : i32
    %c0_i32_1 = arith.constant 0 : i32
    return %c0_i32, %c0_i32_0 : i32, i32
  }
  func.func @transform_3(%arg0: i32) -> (i32, i32) {
    %c0_i32 = arith.constant 0 : i32
    %c0_i32_0 = arith.constant 0 : i32
    %c0_i32_1 = arith.constant 0 : i32
    return %c0_i32, %c0_i32_0 : i32, i32
  }
  func.func @transform_4(%arg0: i32) -> (i32, i32) {
    %c0_i32 = arith.constant 0 : i32
    %c0_i32_0 = arith.constant 0 : i32
    %c0_i32_1 = arith.constant 0 : i32
    return %c0_i32, %c0_i32_0 : i32, i32
  }
  func.func @transform_5(%arg0: i32) -> (i32, i32) {
    %c0_i32 = arith.constant 0 : i32
    %c0_i32_0 = arith.constant 0 : i32
    %c0_i32_1 = arith.constant 0 : i32
    return %c0_i32, %c0_i32_0 : i32, i32
  }
  func.func @transform_6(%arg0: i32) -> (i32, i32) {
    %c0_i32 = arith.constant 0 : i32
    %c0_i32_0 = arith.constant 0 : i32
    %c0_i32_1 = arith.constant 0 : i32
    return %c0_i32, %c0_i32_0 : i32, i32
  }
  func.func @transform_7(%arg0: i32) -> (i32, i32) {
    %c0_i32 = arith.constant 0 : i32
    %c0_i32_0 = arith.constant 0 : i32
    return %arg0, %c0_i32 : i32, i32
  }
}

</mosaic_0001>

<llo_original>
// kernel: dqn_forward.1
$region0: #{dqn_forward.1}
  #allocation0 [shape = 'u32[]', space=smem, size = 0x4, offset = 0x4, fixed_abs, tag = 'smem constant byte address 0x4 - core index']
  #allocation1 [shape = 'u32[72,128]{1,0:T(1,128)}', space=vmem, size = 0x9000, scoped, tag = 'internal scratch']
  %s0 = inlined_call_operand.vmem [shape: bf16[64,32], index: 0, kind: input, shape index: {}]
  %s1 = inlined_call_operand.vmem [shape: bf16[32,128], index: 1, kind: input, shape index: {}]
  %s2 = inlined_call_operand.vmem [shape: f32[1,128], index: 2, kind: input, shape index: {}]
  %s3 = inlined_call_operand.vmem [shape: bf16[128,128], index: 3, kind: input, shape index: {}]
  %s4 = inlined_call_operand.vmem [shape: f32[1,128], index: 4, kind: input, shape index: {}]
  %s5 = inlined_call_operand.vmem [shape: bf16[128,8], index: 5, kind: input, shape index: {}]
  %s6 = inlined_call_operand.vmem [shape: f32[1,8], index: 6, kind: input, shape index: {}]
  %s7 = inlined_call_operand.vmem [shape: f32[64,8], index: 7, kind: output, shape index: {}]
  %s8 = sld [smem:[#allocation0]]
  $region61: #{dqn_forward.1} parent=0
    _
  %s10 = ssub.s32 1, %s8
  %s11 = scalar_select 0, %s10, %s8
  loop: start=0, step=1, limit=4
  $region2: #{dqn_forward.1} parent=0 // loop_pre_header
    _
  $region3: #{dqn_forward.1} parent=0 // loop_header
    %s13 = sphi 0, %s17
    %p14 = scmp.ge.s32.totalorder %s13, 4
    %s23 = sphi 0, %s25
    %s26 = sphi 0, %s23
    %s27 = sphi 0, %s26
    %s43 = sphi 0, %s27
    %s47 = sphi 0, %s47
    %s49 = sphi 0, %s47
    %s50 = sphi 0, %s49
    %s64 = sphi 0, %s50
    %s68 = sphi 0, %s68
    %s70 = sphi 0, %s68
    %s71 = sphi 0, %s70
    %s85 = sphi 0, %s71
    %s89 = sphi 0, %s89
    %s91 = sphi 0, %s89
    %s92 = sphi 0, %s91
    %s106 = sphi 0, %s92
    %s110 = sphi 0, %s110
    %s112 = sphi 0, %s110
    %s113 = sphi 0, %s112
    %s127 = sphi 0, %s113
    %s131 = sphi 0, %s131
    %s133 = sphi 0, %s131
    %s134 = sphi 0, %s133
    %s148 = sphi 0, %s134
    %s152 = sphi 0, %s152
    %s154 = sphi 0, %s152
    %s155 = sphi 0, %s154
    %s169 = sphi 0, %s155
    %s175 = sphi 0, %s177
    %s178 = sphi 0, %s175
    %s179 = sphi 0, %s178
    %s195 = sphi 0, %s179
  $region4: #{dqn_forward.1} parent=0 // loop_header_branch
    %16 = sbr.rel (%p14) target = $region8
  $region5: #{dqn_forward.1} parent=0 // loop_body
    %s18 = ssub.s32 %s13, 1
    %s19 = ssub.s32 %s13, 2
    %s20 = sadd.s32 %s13, 1
    %s21 = ssub.s32 %s13, %s20
    %p22 = scmp.eq.s32.totalorder %s21, 0
    %s24 = sadd.s32 %s23, 1
    %s25 = scalar_select %p22, %s23, %s24
    %p28 = pneg %p22
    %p29 = scmp.eq.s32.totalorder %s13, 1
    %p30 = por %p28, %p29
    %p31 = scmp.ne.s32.totalorder %s23, %s26
    %p32 = scmp.eq.s32.totalorder %s13, 0
    %p33 = por %p31, %p32
    %p34 = scmp.ne.s32.totalorder %s23, %s26
    %p35 = scmp.eq.s32.totalorder %s18, 1
    %p36 = por %p34, %p35
    %p37 = scmp.ne.s32.totalorder %s26, %s27
    %p38 = scmp.eq.s32.totalorder %s18, 0
    %p39 = por %p37, %p38
    %p40 = scmp.ne.s32.totalorder %s26, %s27
    %p41 = scmp.eq.s32.totalorder %s19, 1
    %p42 = por %p40, %p41
    %p44 = scmp.ne.s32.totalorder %s27, %s43
    %p45 = scmp.eq.s32.totalorder %s19, 0
    %p46 = por %p44, %p45
    %s48 = sadd.s32 %s47, 1
    %p51 = scmp.eq.s32.totalorder %s13, 1
    %p52 = scmp.ne.s32.totalorder %s47, %s49
    %p53 = scmp.eq.s32.totalorder %s13, 0
    %p54 = por %p52, %p53
    %p55 = scmp.ne.s32.totalorder %s47, %s49
    %p56 = scmp.eq.s32.totalorder %s18, 1
    %p57 = por %p55, %p56
    %p58 = scmp.ne.s32.totalorder %s49, %s50
    %p59 = scmp.eq.s32.totalorder %s18, 0
    %p60 = por %p58, %p59
    %p61 = scmp.ne.s32.totalorder %s49, %s50
    %p62 = scmp.eq.s32.totalorder %s19, 1
    %p63 = por %p61, %p62
    %p65 = scmp.ne.s32.totalorder %s50, %s64
    %p66 = scmp.eq.s32.totalorder %s19, 0
    %p67 = por %p65, %p66
    %s69 = sadd.s32 %s68, 1
    %p72 = scmp.eq.s32.totalorder %s13, 1
    %p73 = scmp.ne.s32.totalorder %s68, %s70
    %p74 = scmp.eq.s32.totalorder %s13, 0
    %p75 = por %p73, %p74
    %p76 = scmp.ne.s32.totalorder %s68, %s70
    %p77 = scmp.eq.s32.totalorder %s18, 1
    %p78 = por %p76, %p77
    %p79 = scmp.ne.s32.totalorder %s70, %s71
    %p80 = scmp.eq.s32.totalorder %s18, 0
    %p81 = por %p79, %p80
    %p82 = scmp.ne.s32.totalorder %s70, %s71
    %p83 = scmp.eq.s32.totalorder %s19, 1
    %p84 = por %p82, %p83
    %p86 = scmp.ne.s32.totalorder %s71, %s85
    %p87 = scmp.eq.s32.totalorder %s19, 0
    %p88 = por %p86, %p87
    %s90 = sadd.s32 %s89, 1
    %p93 = scmp.eq.s32.totalorder %s13, 1
    %p94 = scmp.ne.s32.totalorder %s89, %s91
    %p95 = scmp.eq.s32.totalorder %s13, 0
    %p96 = por %p94, %p95
    %p97 = scmp.ne.s32.totalorder %s89, %s91
    %p98 = scmp.eq.s32.totalorder %s18, 1
    %p99 = por %p97, %p98
    %p100 = scmp.ne.s32.totalorder %s91, %s92
    %p101 = scmp.eq.s32.totalorder %s18, 0
    %p102 = por %p100, %p101
    %p103 = scmp.ne.s32.totalorder %s91, %s92
    %p104 = scmp.eq.s32.totalorder %s19, 1
    %p105 = por %p103, %p104
    %p107 = scmp.ne.s32.totalorder %s92, %s106
    %p108 = scmp.eq.s32.totalorder %s19, 0
    %p109 = por %p107, %p108
    %s111 = sadd.s32 %s110, 1
    %p114 = scmp.eq.s32.totalorder %s13, 1
    %p115 = scmp.ne.s32.totalorder %s110, %s112
    %p116 = scmp.eq.s32.totalorder %s13, 0
    %p117 = por %p115, %p116
    %p118 = scmp.ne.s32.totalorder %s110, %s112
    %p119 = scmp.eq.s32.totalorder %s18, 1
    %p120 = por %p118, %p119
    %p121 = scmp.ne.s32.totalorder %s112, %s113
    %p122 = scmp.eq.s32.totalorder %s18, 0
    %p123 = por %p121, %p122
    %p124 = scmp.ne.s32.totalorder %s112, %s113
    %p125 = scmp.eq.s32.totalorder %s19, 1
    %p126 = por %p124, %p125
    %p128 = scmp.ne.s32.totalorder %s113, %s127
    %p129 = scmp.eq.s32.totalorder %s19, 0
    %p130 = por %p128, %p129
    %s132 = sadd.s32 %s131, 1
    %p135 = scmp.eq.s32.totalorder %s13, 1
    %p136 = scmp.ne.s32.totalorder %s131, %s133
    %p137 = scmp.eq.s32.totalorder %s13, 0
    %p138 = por %p136, %p137
    %p139 = scmp.ne.s32.totalorder %s131, %s133
    %p140 = scmp.eq.s32.totalorder %s18, 1
    %p141 = por %p139, %p140
    %p142 = scmp.ne.s32.totalorder %s133, %s134
    %p143 = scmp.eq.s32.totalorder %s18, 0
    %p144 = por %p142, %p143
    %p145 = scmp.ne.s32.totalorder %s133, %s134
    %p146 = scmp.eq.s32.totalorder %s19, 1
    %p147 = por %p145, %p146
    %p149 = scmp.ne.s32.totalorder %s134, %s148
    %p150 = scmp.eq.s32.totalorder %s19, 0
    %p151 = por %p149, %p150
    %s153 = sadd.s32 %s152, 1
    %p156 = scmp.eq.s32.totalorder %s13, 1
    %p157 = scmp.ne.s32.totalorder %s152, %s154
    %p158 = scmp.eq.s32.totalorder %s13, 0
    %p159 = por %p157, %p158
    %p160 = scmp.ne.s32.totalorder %s152, %s154
    %p161 = scmp.eq.s32.totalorder %s18, 1
    %p162 = por %p160, %p161
    %p163 = scmp.ne.s32.totalorder %s154, %s155
    %p164 = scmp.eq.s32.totalorder %s18, 0
    %p165 = por %p163, %p164
    %p166 = scmp.ne.s32.totalorder %s154, %s155
    %p167 = scmp.eq.s32.totalorder %s19, 1
    %p168 = por %p166, %p167
    %p170 = scmp.ne.s32.totalorder %s155, %s169
    %p171 = scmp.eq.s32.totalorder %s19, 0
    %p172 = por %p170, %p171
    %s173 = ssub.s32 %s13, %s20
    %p174 = scmp.eq.s32.totalorder %s173, 0
    %s176 = sadd.s32 %s175, 1
    %s177 = scalar_select %p174, %s175, %s176
    %p180 = pneg %p174
    %p181 = scmp.eq.s32.totalorder %s13, 1
    %p182 = por %p180, %p181
    %p183 = scmp.ne.s32.totalorder %s175, %s178
    %p184 = scmp.eq.s32.totalorder %s13, 0
    %p185 = por %p183, %p184
    %p186 = scmp.ne.s32.totalorder %s175, %s178
    %p187 = scmp.eq.s32.totalorder %s18, 1
    %p188 = por %p186, %p187
    %p189 = scmp.ne.s32.totalorder %s178, %s179
    %p190 = scmp.eq.s32.totalorder %s18, 0
    %p191 = por %p189, %p190
    %p192 = scmp.ne.s32.totalorder %s178, %s179
    %p193 = scmp.eq.s32.totalorder %s19, 1
    %p194 = por %p192, %p193
    %p196 = scmp.ne.s32.totalorder %s179, %s195
    %p197 = scmp.eq.s32.totalorder %s19, 0
    %p198 = por %p196, %p197
    %p199 = scmp.le.s32.totalorder 1, %s13
    %p200 = scmp.lt.s32.totalorder %s13, 3
    %p201 = pnand %p199, %p200
    %p202 = pneg %p201
    // Predicated region
    $region9: #{dqn_forward.1} parent=5 // pred_check
      _
    $region10: #{dqn_forward.1} parent=5 // pred_check_branch
      %204 = sbr.rel (%p201) target = $region12
    $region11: #{dqn_forward.1} parent=5 // pred_region
      %s205 = ssub.s32 %s13, 1
      // Predicated region
      $region13: #{dqn_forward.1} parent=11 // pred_check
        %p206 = pneg %p60
      $region14: #{dqn_forward.1} parent=11 // pred_check_branch
        %208 = sbr.rel (%p206) target = $region16
      $region15: #{dqn_forward.1} parent=11 // pred_region
        _
      $region16: #{dqn_forward.1} parent=11 // pred_fallthru
        _
      // Predicated region
      $region17: #{dqn_forward.1} parent=11 // pred_check
        %p209 = pneg %p81
      $region18: #{dqn_forward.1} parent=11 // pred_check_branch
        %211 = sbr.rel (%p209) target = $region20
      $region19: #{dqn_forward.1} parent=11 // pred_region
        _
      $region20: #{dqn_forward.1} parent=11 // pred_fallthru
        _
      // Predicated region
      $region21: #{dqn_forward.1} parent=11 // pred_check
        %p212 = pneg %p102
      $region22: #{dqn_forward.1} parent=11 // pred_check_branch
        %214 = sbr.rel (%p212) target = $region24
      $region23: #{dqn_forward.1} parent=11 // pred_region
        _
      $region24: #{dqn_forward.1} parent=11 // pred_fallthru
        _
      // Predicated region
      $region25: #{dqn_forward.1} parent=11 // pred_check
        %p215 = pneg %p123
      $region26: #{dqn_forward.1} parent=11 // pred_check_branch
        %217 = sbr.rel (%p215) target = $region28
      $region27: #{dqn_forward.1} parent=11 // pred_region
        _
      $region28: #{dqn_forward.1} parent=11 // pred_fallthru
        _
      // Predicated region
      $region29: #{dqn_forward.1} parent=11 // pred_check
        %p218 = pneg %p144
      $region30: #{dqn_forward.1} parent=11 // pred_check_branch
        %220 = sbr.rel (%p218) target = $region32
      $region31: #{dqn_forward.1} parent=11 // pred_region
        _
      $region32: #{dqn_forward.1} parent=11 // pred_fallthru
        _
      // Predicated region
      $region33: #{dqn_forward.1} parent=11 // pred_check
        %p221 = pneg %p165
      $region34: #{dqn_forward.1} parent=11 // pred_check_branch
        %223 = sbr.rel (%p221) target = $region36
      $region35: #{dqn_forward.1} parent=11 // pred_region
        _
      $region36: #{dqn_forward.1} parent=11 // pred_fallthru
        _
    $region12: #{dqn_forward.1} parent=5 // pred_fallthru
      _
    %p224 = scmp.lt.s32.totalorder %s13, 2
    // Predicated region
    $region37: #{dqn_forward.1} parent=5 // pred_check
      %p225 = pneg %p224
    $region38: #{dqn_forward.1} parent=5 // pred_check_branch
      %227 = sbr.rel (%p225) target = $region40
    $region39: #{dqn_forward.1} parent=5 // pred_region
      // Predicated region
      $region41: #{dqn_forward.1} parent=39 // pred_check
        %p228 = pneg %p33
      $region42: #{dqn_forward.1} parent=39 // pred_check_branch
        %230 = sbr.rel (%p228) target = $region44
      $region43: #{dqn_forward.1} parent=39 // pred_region
        %s231 = smul.u32 4, %s13
        %p232 = scmp.lt.s32.totalorder %s231, 7
        %s233 = scalar_select %p232, %s231, 7
        %s234 = smul.addr %s233, 4
        %s235 = scalar_lea.vmem %s0, %s234
        %s236 = smul.u32 4, %s13
      $region44: #{dqn_forward.1} parent=39 // pred_fallthru
        _
    $region40: #{dqn_forward.1} parent=5 // pred_fallthru
      _
    %p237 = scmp.le.s32.totalorder 1, %s13
    %p238 = scmp.lt.s32.totalorder %s13, 3
    %p239 = pnand %p237, %p238
    %p240 = pneg %p239
    // Predicated region
    $region45: #{dqn_forward.1} parent=5 // pred_check
      _
    $region46: #{dqn_forward.1} parent=5 // pred_check_branch
      %242 = sbr.rel (%p239) target = $region48
    $region47: #{dqn_forward.1} parent=5 // pred_region
      %s243 = ssub.s32 %s13, 1
      %s244 = smul.u32 4, %s18
      %p245 = scmp.lt.s32.totalorder %s244, 7
      %s246 = scalar_select %p245, %s244, 7
      %s247 = smul.addr %s246, 4
      %s248 = scalar_lea.vmem %s0, %s247
      %p249 = pneg %p39
      %p250 = pneg %p36
      %p251 = pneg %p60
      %p252 = pneg %p57
      %p253 = pneg %p81
      %p254 = pneg %p78
      %p255 = pneg %p102
      %p256 = pneg %p99
      %p257 = pneg %p123
      %p258 = pneg %p120
      %p259 = pneg %p144
      %p260 = pneg %p141
      %p261 = pneg %p165
      %p262 = pneg %p162
      %p263 = pneg %p191
      %p264 = pneg %p188
      %s265 = smul.u32 4, %s18
      %p266 = scmp.lt.s32.totalorder %s265, 7
      %s267 = scalar_select %p266, %s265, 7
      %s268 = smul.addr %s267, 8
      %s269 = scalar_lea.vmem %s7, %s268
      %s270 = smul.u32 4, %s18
      %p271 = scmp.lt.s32.totalorder %s270, 7
      %s272 = scalar_select %p271, %s270, 7
      %s273 = smul.addr %s272, 4
      %s274 = scalar_lea.vmem %s0, %s273
      %s275 = smul.u32 4, %s18
      %s276 = smul.u32 4, %s18
      %p277 = scmp.lt.s32.totalorder %s276, 7
      %s278 = scalar_select %p277, %s276, 7
      %s279 = smul.addr %s278, 8
      %s280 = scalar_lea.vmem %s7, %s279
      %s281 = smul.u32 4, %s18
      %v283 = vld [vmem:[%s274] sm:$0xf]
      %v284 = vld [vmem:[%s274 + $0x4] sm:$0xf]
      %v285 = vld [vmem:[%s274 + $0x8] sm:$0xf]
      %v286 = vld [vmem:[%s274 + $0xc] sm:$0xf]
      %v287 = vld [vmem:[%s1] sm:$0xf]
      %v288 = vld [vmem:[%s1 + $0x4] sm:$0xf]
      %v289 = vld [vmem:[%s1 + $0x8] sm:$0xf]
      %v290 = vld [vmem:[%s1 + $0xc] sm:$0xf]
      %v291 = vld [vmem:[%s2] sm:$0x1]
      %v293 = vperm.slane %v291, 0
      %v299 = vunpack.c.l.b16 %v283
      %v300 = vunpack.c.l.b16 %v284
      %v301 = vunpack.c.l.b16 %v285
      %v302 = vunpack.c.l.b16 %v286
      %v303 = vpack.c.b16 %v300, %v299
      %v304 = vpack.c.b16 %v302, %v301
      %v309 = vunpack.c.l.b16 %v287
      %v310 = vunpack.c.l.b16 %v288
      %v311 = vunpack.c.l.b16 %v289
      %v312 = vunpack.c.l.b16 %v290
      %v313 = vpack.c.b16 %v310, %v309
      %v314 = vpack.c.b16 %v312, %v311
      %vm317 = vcmask 261120
      %v319 = vsel %vm317, %v303, 0
      %v322 = vsel %vm317, %v304, 0
      %324 = vmatpush.bf16.msra.mxu0 0
      %325 = vmatpush.bf16.msra.mxu0 0
      %326 = vmatpush.bf16.msra.mxu0 0
      %327 = vmatpush.bf16.msra.mxu0 0
      %328 = vmatpush.bf16.msra.mxu0 0
      %329 = vmatpush.bf16.msra.mxu0 0
      %330 = vmatpush.bf16.msra.mxu0 %v314
      %331 = vmatpush.bf16.msra.mxu0 %v313
      %332 = vmatmul.bf16.gmra.mxu0 %v319
      %v333 = vpop.f32.mrf.mxu0
      %v334 = vadd.f32 %v293, %v333
      %v335 = vpop.f32.mrf.mxu0
      %v336 = vadd.f32 %v293, %v335
      %337 = vmatmul.bf16.gmra.mxu0 %v322
      %v338 = vpop.f32.mrf.mxu0
      %v339 = vadd.f32 %v293, %v338
      %v340 = vpop.f32.mrf.mxu0
      %v341 = vadd.f32 %v293, %v340
      %342 = vdwg.mxu0
      %v343 = vmax.f32 %v334, 0.0
      %v344 = vmax.f32 %v336, 0.0
      %v345 = vmax.f32 %v339, 0.0
      %v346 = vmax.f32 %v341, 0.0
      %v347 = vpack.c.bf16 %v344, %v343
      %v348 = vpack.c.bf16 %v346, %v345
      %v349 = vld [vmem:[%s3] sm:$0xf]
      %v350 = vld [vmem:[%s3 + $0x4] sm:$0xf]
      %v351 = vld [vmem:[%s3 + $0x8] sm:$0xf]
      %v352 = vld [vmem:[%s3 + $0xc] sm:$0xf]
      %v353 = vld [vmem:[%s3 + $0x10] sm:$0xf]
      %v354 = vld [vmem:[%s3 + $0x14] sm:$0xf]
      %v355 = vld [vmem:[%s3 + $0x18] sm:$0xf]
      %v356 = vld [vmem:[%s3 + $0x1c] sm:$0xf]
      %v357 = vld [vmem:[%s3 + $0x20] sm:$0xf]
      %v358 = vld [vmem:[%s3 + $0x24] sm:$0xf]
      %v359 = vld [vmem:[%s3 + $0x28] sm:$0xf]
      %v360 = vld [vmem:[%s3 + $0x2c] sm:$0xf]
      %v361 = vld [vmem:[%s3 + $0x30] sm:$0xf]
      %v362 = vld [vmem:[%s3 + $0x34] sm:$0xf]
      %v363 = vld [vmem:[%s3 + $0x38] sm:$0xf]
      %v364 = vld [vmem:[%s3 + $0x3c] sm:$0xf]
      %v365 = vld [vmem:[%s4] sm:$0x1]
      %v367 = vperm.slane %v365, 0
      %v385 = vunpack.c.l.b16 %v349
      %v386 = vunpack.c.l.b16 %v350
      %v387 = vunpack.c.l.b16 %v351
      %v388 = vunpack.c.l.b16 %v352
      %v389 = vunpack.c.l.b16 %v353
      %v390 = vunpack.c.l.b16 %v354
      %v391 = vunpack.c.l.b16 %v355
      %v392 = vunpack.c.l.b16 %v356
      %v393 = vunpack.c.l.b16 %v357
      %v394 = vunpack.c.l.b16 %v358
      %v395 = vunpack.c.l.b16 %v359
      %v396 = vunpack.c.l.b16 %v360
      %v397 = vunpack.c.l.b16 %v361
      %v398 = vunpack.c.l.b16 %v362
      %v399 = vunpack.c.l.b16 %v363
      %v400 = vunpack.c.l.b16 %v364
      %v401 = vpack.c.b16 %v386, %v385
      %v402 = vpack.c.b16 %v388, %v387
      %v403 = vpack.c.b16 %v390, %v389
      %v404 = vpack.c.b16 %v392, %v391
      %v405 = vpack.c.b16 %v394, %v393
      %v406 = vpack.c.b16 %v396, %v395
      %v407 = vpack.c.b16 %v398, %v397
      %v408 = vpack.c.b16 %v400, %v399
      %417 = vmatpush.bf16.msra.mxu0 %v408
      %418 = vmatpush.bf16.msra.mxu0 %v407
      %419 = vmatpush.bf16.msra.mxu0 %v406
      %420 = vmatpush.bf16.msra.mxu0 %v405
      %421 = vmatpush.bf16.msra.mxu0 %v404
      %422 = vmatpush.bf16.msra.mxu0 %v403
      %423 = vmatpush.bf16.msra.mxu0 %v402
      %424 = vmatpush.bf16.msra.mxu0 %v401
      %425 = vmatmul.bf16.gmra.mxu0 %v347
      %v426 = vpop.f32.mrf.mxu0
      %v427 = vadd.f32 %v367, %v426
      %v428 = vpop.f32.mrf.mxu0
      %v429 = vadd.f32 %v367, %v428
      %430 = vmatmul.bf16.gmra.mxu0 %v348
      %v431 = vpop.f32.mrf.mxu0
      %v432 = vadd.f32 %v367, %v431
      %v433 = vpop.f32.mrf.mxu0
      %v434 = vadd.f32 %v367, %v433
      %435 = vdwg.mxu0
      %v436 = vmax.f32 %v427, 0.0
      %v437 = vmax.f32 %v429, 0.0
      %v438 = vmax.f32 %v432, 0.0
      %v439 = vmax.f32 %v434, 0.0
      %v440 = vpack.c.bf16 %v437, %v436
      %v441 = vpack.c.bf16 %v439, %v438
      %v442 = vld [vmem:[%s5] sm:$0xf]
      %v443 = vld [vmem:[%s5 + $0x4] sm:$0xf]
      %v444 = vld [vmem:[%s5 + $0x8] sm:$0xf]
      %v445 = vld [vmem:[%s5 + $0xc] sm:$0xf]
      %v446 = vld [vmem:[%s5 + $0x10] sm:$0xf]
      %v447 = vld [vmem:[%s5 + $0x14] sm:$0xf]
      %v448 = vld [vmem:[%s5 + $0x18] sm:$0xf]
      %v449 = vld [vmem:[%s5 + $0x1c] sm:$0xf]
      %v450 = vld [vmem:[%s5 + $0x20] sm:$0xf]
      %v451 = vld [vmem:[%s5 + $0x24] sm:$0xf]
      %v452 = vld [vmem:[%s5 + $0x28] sm:$0xf]
      %v453 = vld [vmem:[%s5 + $0x2c] sm:$0xf]
      %v454 = vld [vmem:[%s5 + $0x30] sm:$0xf]
      %v455 = vld [vmem:[%s5 + $0x34] sm:$0xf]
      %v456 = vld [vmem:[%s5 + $0x38] sm:$0xf]
      %v457 = vld [vmem:[%s5 + $0x3c] sm:$0xf]
      %v458 = vld [vmem:[%s6] sm:$0x1]
      %v460 = vperm.slane %v458, 0
      %v478 = vunpack.c.l.b16 %v442
      %v479 = vunpack.c.l.b16 %v443
      %v480 = vunpack.c.l.b16 %v444
      %v481 = vunpack.c.l.b16 %v445
      %v482 = vunpack.c.l.b16 %v446
      %v483 = vunpack.c.l.b16 %v447
      %v484 = vunpack.c.l.b16 %v448
      %v485 = vunpack.c.l.b16 %v449
      %v486 = vunpack.c.l.b16 %v450
      %v487 = vunpack.c.l.b16 %v451
      %v488 = vunpack.c.l.b16 %v452
      %v489 = vunpack.c.l.b16 %v453
      %v490 = vunpack.c.l.b16 %v454
      %v491 = vunpack.c.l.b16 %v455
      %v492 = vunpack.c.l.b16 %v456
      %v493 = vunpack.c.l.b16 %v457
      %v494 = vpack.c.b16 %v479, %v478
      %v495 = vpack.c.b16 %v481, %v480
      %v496 = vpack.c.b16 %v483, %v482
      %v497 = vpack.c.b16 %v485, %v484
      %v498 = vpack.c.b16 %v487, %v486
      %v499 = vpack.c.b16 %v489, %v488
      %v500 = vpack.c.b16 %v491, %v490
      %v501 = vpack.c.b16 %v493, %v492
      %510 = vmatpush.bf16.msra.mxu0 %v501
      %511 = vmatpush.bf16.msra.mxu0 %v500
      %512 = vmatpush.bf16.msra.mxu0 %v499
      %513 = vmatpush.bf16.msra.mxu0 %v498
      %514 = vmatpush.bf16.msra.mxu0 %v497
      %515 = vmatpush.bf16.msra.mxu0 %v496
      %516 = vmatpush.bf16.msra.mxu0 %v495
      %517 = vmatpush.bf16.msra.mxu0 %v494
      %518 = vmatmul.bf16.gmra.mxu0 %v440
      %v519 = vpop.f32.mrf.mxu0
      %v520 = vadd.f32 %v460, %v519
      %v521 = vpop.f32.mrf.mxu0
      %v522 = vadd.f32 %v460, %v521
      %523 = vmatmul.bf16.gmra.mxu0 %v441
      %v524 = vpop.f32.mrf.mxu0
      %v525 = vadd.f32 %v460, %v524
      %v526 = vpop.f32.mrf.mxu0
      %v527 = vadd.f32 %v460, %v526
      %528 = vdwg.mxu0
      %vm529 = vcmask 64512
      %530 = vst.msk [vmem:[%s280] sm:$0xff] %vm529, %v520
      %531 = vst.msk [vmem:[%s280 + $0x8] sm:$0xff] %vm529, %v522
      %532 = vst.msk [vmem:[%s280 + $0x10] sm:$0xff] %vm529, %v525
      %533 = vst.msk [vmem:[%s280 + $0x18] sm:$0xff] %vm529, %v527
      %s534 = smul.u32 4, %s18
      %p535 = scmp.lt.s32.totalorder %s534, 7
      %s536 = scalar_select %p535, %s534, 7
      %s537 = smul.addr %s536, 8
      %s538 = scalar_lea.vmem %s7, %s537
      // Predicated region
      $region49: #{dqn_forward.1} parent=47 // pred_check
        %p539 = pneg %p188
      $region50: #{dqn_forward.1} parent=47 // pred_check_branch
        %541 = sbr.rel (%p539) target = $region52
      $region51: #{dqn_forward.1} parent=47 // pred_region
        %s542 = smul.u32 4, %s18
      $region52: #{dqn_forward.1} parent=47 // pred_fallthru
        _
    $region48: #{dqn_forward.1} parent=5 // pred_fallthru
      _
    %p543 = scmp.le.s32.totalorder 2, %s13
    // Predicated region
    $region53: #{dqn_forward.1} parent=5 // pred_check
      %p544 = pneg %p543
    $region54: #{dqn_forward.1} parent=5 // pred_check_branch
      %546 = sbr.rel (%p544) target = $region56
    $region55: #{dqn_forward.1} parent=5 // pred_region
      %s547 = ssub.s32 %s13, 2
      // Predicated region
      $region57: #{dqn_forward.1} parent=55 // pred_check
        %p548 = pneg %p194
      $region58: #{dqn_forward.1} parent=55 // pred_check_branch
        %550 = sbr.rel (%p548) target = $region60
      $region59: #{dqn_forward.1} parent=55 // pred_region
        %s551 = smul.u32 4, %s19
        %p552 = scmp.lt.s32.totalorder %s551, 7
        %s553 = scalar_select %p552, %s551, 7
        %s554 = smul.addr %s553, 8
        %s555 = scalar_lea.vmem %s7, %s554
      $region60: #{dqn_forward.1} parent=55 // pred_fallthru
        _
    $region56: #{dqn_forward.1} parent=5 // pred_fallthru
      _
  $region6: #{dqn_forward.1} parent=0 // loop_footer
    %s17 = sadd.s32 1, %s13
  $region7: #{dqn_forward.1} parent=0 // loop_footer_branch
    %12 = sbr.rel target = $region3
  $region8: #{dqn_forward.1} parent=0 // loop_exit
    _

</llo_original>
